<compile_context>
chip_gen: v5e
topology: v5e:2x2
jax: 0.10.0
libtpu: 0.0.40
codegen_flags: <defaults>
</compile_context>

<pallas_src>
import functools
import math

import jax
import jax.numpy as jnp
from jax import lax
from jax.experimental import pallas as pl
from jax.experimental.pallas import tpu as pltpu

LANE = 128  # TPU lane width


def _round_up(n, m):
    return ((n + m - 1) // m) * m


def _self_attention_kernel(x_ref, wqkv_ref, bqkv_ref, wo_ref, bo_ref, o_ref,
                           *, hidden_pad, compute_dtype):
    # x_ref:    (Bt, S, Dp)   one batch-split per grid step, dtype=compute_dtype
    # wqkv_ref: (Dp, 3*Hp)    fused Q/K/V weight, [in, out] layout, compute_dtype,
    #                         with the 1/sqrt(D) scale pre-folded into the Q columns
    # bqkv_ref: (1, 3*Hp)     f32 (adds into the f32 accumulator)
    # wo_ref:   (Hp, Dp)      compute_dtype
    # bo_ref:   (1, Dp)       f32
    # o_ref:    (Bt, S, Dp)
    hp = hidden_pad
    bt, s, dp = x_ref.shape
    rows = bt * s

    # Collapse leading dims: one [rows, Dp] x [Dp, 3Hp] MXU problem (max M).
    x2 = x_ref[...].reshape(rows, dp)
    qkv = jnp.dot(x2, wqkv_ref[...],
                  preferred_element_type=jnp.float32) + bqkv_ref[...]  # [rows, 3Hp] f32

    # Slices land at 128-aligned lane offsets (Hp is a multiple of 128).
    # q is already scaled by 1/sqrt(D) via the weight prep.
    q = qkv[:, 0 * hp:1 * hp].reshape(bt, s, hp).astype(compute_dtype)
    k = qkv[:, 1 * hp:2 * hp].reshape(bt, s, hp).astype(compute_dtype)
    v = qkv[:, 2 * hp:3 * hp].reshape(bt, s, hp).astype(compute_dtype)

    # scores[b, i, j] = sum_h q[b,i,h] * k[b,j,h]   (no k.T materialization)
    scores = lax.dot_general(
        q, k,
        dimension_numbers=(((2,), (2,)), ((0,), (0,))),
        preferred_element_type=jnp.float32,
    )                                             # [Bt, S, S] f32

    # Numerically-stable softmax over the last axis.
    # TODO(synk): for realistic S (>= ~512) replace this monolithic [S, S]
    # buffer with a flash-style online softmax tiled over KV blocks (KV axis
    # last, "arbitrary"); at S=8 the attention path is filler under the
    # projection matmuls, so the simple form is fine.
    m = jnp.max(scores, axis=-1, keepdims=True)
    p = jnp.exp(scores - m)
    denom = jnp.sum(p, axis=-1, keepdims=True)
    attn = (p * pl.reciprocal(denom, approx=True)).astype(compute_dtype)  # EUP vrcp

    attn_out = lax.dot_general(
        attn, v,
        dimension_numbers=(((2,), (1,)), ((0,), (0,))),
        preferred_element_type=jnp.float32,
    )                                             # [Bt, S, Hp] f32

    # Output projection as a plain 2-D matmul on the collapsed slab.
    y = jnp.dot(attn_out.reshape(rows, hp).astype(compute_dtype), wo_ref[...],
                preferred_element_type=jnp.float32) + bo_ref[...]  # [rows, Dp] f32

    o_ref[...] = y.reshape(bt, s, dp).astype(o_ref.dtype)


def prepare_params(params, *, compute_dtype=jnp.float32):
    """One-time weight preparation (call once, reuse across forward calls).

    * zero-pads D/H to the 128-lane width (lane-dense loads/stores),
    * fuses Wq/Wk/Wv into a single [Dp, 3*Hp] weight (+ [1, 3*Hp] bias),
    * folds the 1/sqrt(D) attention scale into the Q columns/bias,
    * casts the big weights to compute_dtype (bf16 halves the weight DMA;
      biases stay f32 since they add into f32 accumulators).
    """
    D, H = params["wq"].shape
    Dp = _round_up(D, LANE)
    Hp = _round_up(H, LANE)
    scale = 1.0 / math.sqrt(D)  # matches torch: sqrt(x.shape[-1])

    wqkv = jnp.zeros((Dp, 3 * Hp), jnp.float32)
    wqkv = wqkv.at[:D, 0 * Hp:0 * Hp + H].set(params["wq"] * scale)
    wqkv = wqkv.at[:D, 1 * Hp:1 * Hp + H].set(params["wk"])
    wqkv = wqkv.at[:D, 2 * Hp:2 * Hp + H].set(params["wv"])
    bqkv = jnp.zeros((1, 3 * Hp), jnp.float32)
    bqkv = bqkv.at[0, 0 * Hp:0 * Hp + H].set(params["bq"] * scale)
    bqkv = bqkv.at[0, 1 * Hp:1 * Hp + H].set(params["bk"])
    bqkv = bqkv.at[0, 2 * Hp:2 * Hp + H].set(params["bv"])

    wo = jnp.zeros((Hp, Dp), jnp.float32).at[:H, :D].set(params["wo"])
    bo = jnp.zeros((1, Dp), jnp.float32).at[0, :D].set(params["bo"])

    return dict(
        wqkv=wqkv.astype(compute_dtype),
        bqkv=bqkv,
        wo=wo.astype(compute_dtype),
        bo=bo,
        D=D, H=H, Dp=Dp, Hp=Hp,
        compute_dtype=compute_dtype,
    )


def self_attention_pallas(x, prepared, *, num_batch_splits=1):
    """x: [B, S, D] float32.  prepared: output of prepare_params().

    num_batch_splits: keep 1 (single kernel invocation). Only raise it (e.g. 2
    on v7x so each TensorCore takes half the batches) when each split still
    has >= ~256 rows of M to keep the MXU occupied; below that the split is
    pure grid-step overhead.
    """
    B, S, D = x.shape
    assert D == prepared["D"]
    Dp, Hp = prepared["Dp"], prepared["Hp"]
    cdt = prepared["compute_dtype"]
    assert B % num_batch_splits == 0
    Bt = B // num_batch_splits

    # Only per-call prep on the hot path: lane-dense padding (+ optional cast).
    x_p = jnp.zeros((B, S, Dp), cdt).at[:, :, :D].set(x.astype(cdt))

    kernel = functools.partial(
        _self_attention_kernel, hidden_pad=Hp, compute_dtype=cdt)

    def const(shape):
        # Constant weights/biases: same block for every grid step.
        # NOTE: at realistic D/H (>= ~1024) these should be single-buffered
        # (pipeline_mode=pl.Buffered(1)) and/or N/K-tiled to fit v7x's 64 MiB
        # VMEM; irrelevant at this toy size with grid=(1,).
        return pl.BlockSpec(shape, lambda i: (0,) * len(shape))

    out_p = pl.pallas_call(
        kernel,
        out_shape=jax.ShapeDtypeStruct((B, S, Dp), x.dtype),
        grid_spec=pltpu.PrefetchScalarGridSpec(
            num_scalar_prefetch=0,
            grid=(num_batch_splits,),
            in_specs=[
                pl.BlockSpec((Bt, S, Dp), lambda i: (i, 0, 0)),  # x (batch split)
                const((Dp, 3 * Hp)), const((1, 3 * Hp)),         # fused Wqkv, bqkv
                const((Hp, Dp)), const((1, Dp)),                 # Wo, bo
            ],
            out_specs=pl.BlockSpec((Bt, S, Dp), lambda i: (i, 0, 0)),
        ),
        compiler_params=pltpu.CompilerParams(
            dimension_semantics=("parallel",)),
    )(x_p, prepared["wqkv"], prepared["bqkv"], prepared["wo"], prepared["bo"])

    return out_p[:, :, :D]


def self_attention_ref(x, params):
    """Pure-JAX reference reproducing the PyTorch module semantics."""
    D = x.shape[-1]
    q = x @ params["wq"] + params["bq"]
    k = x @ params["wk"] + params["bk"]
    v = x @ params["wv"] + params["bv"]
    scores = jnp.einsum("bqh,bkh->bqk", q, k) / math.sqrt(D)
    attn = jax.nn.softmax(scores, axis=-1)
    out = jnp.einsum("bqk,bkh->bqh", attn, v)
    return out @ params["wo"] + params["bo"]


def init_params(key, input_dim, hidden_dim):
    """Deterministic init mimicking nn.Linear (uniform +-1/sqrt(in_features)).
    Weights are stored pre-transposed as [in, out]."""
    keys = jax.random.split(key, 8)

    def linear(kw, kb, fan_in, fan_out):
        bound = 1.0 / math.sqrt(fan_in)
        w = jax.random.uniform(kw, (fan_in, fan_out), jnp.float32, -bound, bound)
        b = jax.random.uniform(kb, (fan_out,), jnp.float32, -bound, bound)
        return w, b

    wq, bq = linear(keys[0], keys[1], input_dim, hidden_dim)
    wk, bk = linear(keys[2], keys[3], input_dim, hidden_dim)
    wv, bv = linear(keys[4], keys[5], input_dim, hidden_dim)
    wo, bo = linear(keys[6], keys[7], hidden_dim, input_dim)
    return dict(wq=wq, bq=bq, wk=wk, bk=bk, wv=wv, bv=bv, wo=wo, bo=bo)


if __name__ == "__main__":
    B, S, input_dim, hidden_dim = 2, 8, 32, 32

    key = jax.random.PRNGKey(0)
    kx, kp = jax.random.split(key)
    x = jax.random.normal(kx, (B, S, input_dim), dtype=jnp.float32)
    params = init_params(kp, input_dim, hidden_dim)

    # One-time weight prep (padding + QKV fusion + scale fold), reused per call.
    # On v6e/v7x pass compute_dtype=jnp.bfloat16 here for ~2x MXU throughput
    # and half the weight DMA (tolerance then widens to ~1e-2).
    prepared = jax.tree_util.tree_map(
        lambda a: jax.block_until_ready(a) if isinstance(a, jax.Array) else a,
        prepare_params(params, compute_dtype=jnp.float32))

    out = self_attention_pallas(x, prepared)
    out = jax.block_until_ready(out)

    ref = self_attention_ref(x, params)
    assert out.shape == (B, S, input_dim)
    # Tolerance relaxed slightly vs pure-f32 to cover the EUP approximate
    # reciprocal used in the softmax denominator.
    assert jnp.allclose(out, ref, atol=1e-3, rtol=1e-3), "mismatch vs reference"

    print("KERNEL_OK")
</pallas_src>

<mosaic_0001>
module attributes {stable_mosaic.version = 11 : i64} {
  func.func @_self_attention_kernel(%arg0: i32, %arg1: memref<2x8x128xf32, #tpu.memory_space<vmem>>, %arg2: memref<128x384xf32, #tpu.memory_space<vmem>>, %arg3: memref<1x384xf32, #tpu.memory_space<vmem>>, %arg4: memref<128x128xf32, #tpu.memory_space<vmem>>, %arg5: memref<1x128xf32, #tpu.memory_space<vmem>>, %arg6: memref<2x8x128xf32, #tpu.memory_space<vmem>>) attributes {dimension_semantics = [#tpu.dimension_semantics<parallel>], iteration_bounds = array<i64: 1>, scalar_prefetch = 0 : i64, scratch_operands = 0 : i64, tpu.core_type = #tpu.core_type<tc>, window_params = [{transform_indices = @transform_0, window_bounds = array<i64: 2, 8, 128>}, {pipeline_mode = #tpu.pipeline_mode<synchronous>, transform_indices = @transform_1, window_bounds = array<i64: 128, 384>}, {pipeline_mode = #tpu.pipeline_mode<synchronous>, transform_indices = @transform_2, window_bounds = array<i64: 1, 384>}, {pipeline_mode = #tpu.pipeline_mode<synchronous>, transform_indices = @transform_3, window_bounds = array<i64: 128, 128>}, {pipeline_mode = #tpu.pipeline_mode<synchronous>, transform_indices = @transform_4, window_bounds = array<i64: 1, 128>}, {transform_indices = @transform_5, window_bounds = array<i64: 2, 8, 128>}]} {
    %c0 = arith.constant 0 : index
    %c0_0 = arith.constant 0 : index
    %c0_1 = arith.constant 0 : index
    %0 = vector.load %arg1[%c0, %c0_0, %c0_1] : memref<2x8x128xf32, #tpu.memory_space<vmem>>, vector<2x8x128xf32>
    %1 = vector.shape_cast %0 : vector<2x8x128xf32> to vector<16x128xf32>
    %c0_2 = arith.constant 0 : index
    %c0_3 = arith.constant 0 : index
    %2 = vector.load %arg2[%c0_2, %c0_3] : memref<128x384xf32, #tpu.memory_space<vmem>>, vector<128x384xf32>
    %cst = arith.constant dense<0.000000e+00> : vector<16x384xf32>
    %3 = tpu.matmul %1, %2, %cst {dimension_numbers = #tpu.dot_dimension_numbers<[1], [0], [0], [1], [0, 0, 1, 1], [], []>} : vector<16x128xf32>, vector<128x384xf32>, vector<16x384xf32> -> vector<16x384xf32>
    %c0_4 = arith.constant 0 : index
    %c0_5 = arith.constant 0 : index
    %4 = vector.load %arg3[%c0_4, %c0_5] : memref<1x384xf32, #tpu.memory_space<vmem>>, vector<1x384xf32>
    %5 = vector.broadcast %4 : vector<1x384xf32> to vector<16x384xf32>
    %6 = arith.addf %3, %5 : vector<16x384xf32>
    %7 = vector.extract_strided_slice %6 {offsets = [0, 0], sizes = [16, 128], strides = [1, 1]} : vector<16x384xf32> to vector<16x128xf32>
    %8 = vector.shape_cast %7 : vector<16x128xf32> to vector<2x8x128xf32>
    %9 = vector.extract_strided_slice %6 {offsets = [0, 128], sizes = [16, 128], strides = [1, 1]} : vector<16x384xf32> to vector<16x128xf32>
    %10 = vector.shape_cast %9 : vector<16x128xf32> to vector<2x8x128xf32>
    %11 = vector.extract_strided_slice %6 {offsets = [0, 256], sizes = [16, 128], strides = [1, 1]} : vector<16x384xf32> to vector<16x128xf32>
    %12 = vector.shape_cast %11 : vector<16x128xf32> to vector<2x8x128xf32>
    %cst_6 = arith.constant dense<0.000000e+00> : vector<2x8x8xf32>
    %13 = tpu.matmul %8, %10, %cst_6 {dimension_numbers = #tpu.dot_dimension_numbers<[2], [2], [1], [1], [0, 0, 0, 1, 1, 1], [0], [0]>} : vector<2x8x128xf32>, vector<2x8x128xf32>, vector<2x8x8xf32> -> vector<2x8x8xf32>
    %cst_7 = arith.constant dense<0xFF800000> : vector<2x8xf32>
    %14 = vector.multi_reduction <maximumf>, %13, %cst_7 [2] : vector<2x8x8xf32> to vector<2x8xf32>
    %15 = vector.shape_cast %14 : vector<2x8xf32> to vector<2x8x1xf32>
    %16 = vector.broadcast %15 : vector<2x8x1xf32> to vector<2x8x8xf32>
    %17 = arith.subf %13, %16 : vector<2x8x8xf32>
    %18 = math.exp %17 : vector<2x8x8xf32>
    %cst_8 = arith.constant dense<0.000000e+00> : vector<2x8xf32>
    %19 = vector.multi_reduction <add>, %18, %cst_8 [2] : vector<2x8x8xf32> to vector<2x8xf32>
    %20 = vector.shape_cast %19 : vector<2x8xf32> to vector<2x8x1xf32>
    %21 = tpu.reciprocal %20 {approx = true} : vector<2x8x1xf32> -> vector<2x8x1xf32>
    %22 = vector.broadcast %21 : vector<2x8x1xf32> to vector<2x8x8xf32>
    %23 = arith.mulf %18, %22 : vector<2x8x8xf32>
    %cst_9 = arith.constant dense<0.000000e+00> : vector<2x8x128xf32>
    %24 = tpu.matmul %23, %12, %cst_9 {dimension_numbers = #tpu.dot_dimension_numbers<[2], [1], [1], [2], [0, 0, 0, 1, 1, 2], [0], [0]>} : vector<2x8x8xf32>, vector<2x8x128xf32>, vector<2x8x128xf32> -> vector<2x8x128xf32>
    %25 = vector.shape_cast %24 : vector<2x8x128xf32> to vector<16x128xf32>
    %c0_10 = arith.constant 0 : index
    %c0_11 = arith.constant 0 : index
    %26 = vector.load %arg4[%c0_10, %c0_11] : memref<128x128xf32, #tpu.memory_space<vmem>>, vector<128x128xf32>
    %cst_12 = arith.constant dense<0.000000e+00> : vector<16x128xf32>
    %27 = tpu.matmul %25, %26, %cst_12 {dimension_numbers = #tpu.dot_dimension_numbers<[1], [0], [0], [1], [0, 0, 1, 1], [], []>} : vector<16x128xf32>, vector<128x128xf32>, vector<16x128xf32> -> vector<16x128xf32>
    %c0_13 = arith.constant 0 : index
    %c0_14 = arith.constant 0 : index
    %28 = vector.load %arg5[%c0_13, %c0_14] : memref<1x128xf32, #tpu.memory_space<vmem>>, vector<1x128xf32>
    %29 = vector.broadcast %28 : vector<1x128xf32> to vector<16x128xf32>
    %30 = arith.addf %27, %29 : vector<16x128xf32>
    %31 = vector.shape_cast %30 : vector<16x128xf32> to vector<2x8x128xf32>
    %c0_15 = arith.constant 0 : index
    %c0_16 = arith.constant 0 : index
    %c0_17 = arith.constant 0 : index
    %32 = vector.load %arg6[%c0_15, %c0_16, %c0_17] : memref<2x8x128xf32, #tpu.memory_space<vmem>>, vector<2x8x128xf32>
    tpu.vector_store %arg6[%c0_15, %c0_16, %c0_17], %31 {strides = array<i32>} : memref<2x8x128xf32, #tpu.memory_space<vmem>>, vector<2x8x128xf32>,
    return
  }
  func.func @transform_0(%arg0: i32) -> (i32, i32, i32) {
    %c0_i32 = arith.constant 0 : i32
    %c0_i32_0 = arith.constant 0 : i32
    %c0_i32_1 = arith.constant 0 : i32
    return %arg0, %c0_i32, %c0_i32_0 : i32, i32, i32
  }
  func.func @transform_1(%arg0: i32) -> (i32, i32) {
    %c0_i32 = arith.constant 0 : i32
    %c0_i32_0 = arith.constant 0 : i32
    %c0_i32_1 = arith.constant 0 : i32
    return %c0_i32, %c0_i32_0 : i32, i32
  }
  func.func @transform_2(%arg0: i32) -> (i32, i32) {
    %c0_i32 = arith.constant 0 : i32
    %c0_i32_0 = arith.constant 0 : i32
    %c0_i32_1 = arith.constant 0 : i32
    return %c0_i32, %c0_i32_0 : i32, i32
  }
  func.func @transform_3(%arg0: i32) -> (i32, i32) {
    %c0_i32 = arith.constant 0 : i32
    %c0_i32_0 = arith.constant 0 : i32
    %c0_i32_1 = arith.constant 0 : i32
    return %c0_i32, %c0_i32_0 : i32, i32
  }
  func.func @transform_4(%arg0: i32) -> (i32, i32) {
    %c0_i32 = arith.constant 0 : i32
    %c0_i32_0 = arith.constant 0 : i32
    %c0_i32_1 = arith.constant 0 : i32
    return %c0_i32, %c0_i32_0 : i32, i32
  }
  func.func @transform_5(%arg0: i32) -> (i32, i32, i32) {
    %c0_i32 = arith.constant 0 : i32
    %c0_i32_0 = arith.constant 0 : i32
    %c0_i32_1 = arith.constant 0 : i32
    return %arg0, %c0_i32, %c0_i32_0 : i32, i32, i32
  }
}

</mosaic_0001>

<llo_original>
// kernel: tpu_custom_call.1
$region0: #{tpu_custom_call.1}
  #allocation0 [shape = 'u32[]', space=smem, size = 0x4, offset = 0x4, fixed_abs, tag = 'smem constant byte address 0x4 - core index']
  #allocation1 [shape = 'u32[72,128]{1,0:T(1,128)}', space=vmem, size = 0x9000, scoped, tag = 'internal scratch']
  %s0 = inlined_call_operand.hbm [shape: f32[2,8,128], index: 0, kind: input, shape index: {}]
  %s1 = inlined_call_operand.hbm [shape: f32[128,384], index: 1, kind: input, shape index: {}]
  %s2 = inlined_call_operand.hbm [shape: f32[1,384], index: 2, kind: input, shape index: {}]
  %s3 = inlined_call_operand.hbm [shape: f32[128,128], index: 3, kind: input, shape index: {}]
  %s4 = inlined_call_operand.vmem [shape: f32[1,128], index: 4, kind: input, shape index: {}]
  %s5 = inlined_call_operand.hbm [shape: f32[2,8,128], index: 5, kind: output, shape index: {}]
  %s6 = sld [smem:[#allocation0]]
  $region46: #{tpu_custom_call.1} parent=0
    _
  %s8 = ssub.s32 1, %s6
  %s9 = scalar_select 0, %s8, %s6
  $region1: #{tpu_custom_call.1} parent=0
    #allocation2 [shape = 'u8[8192]{0}', space=vmem, size = 0x2000, scoped, tag = 'input window, operand 0, single buffered']
    #allocation3 [shape = 's32[1]{0}', space=sflag, size = 0x4, scoped, tag = 'scoped memory for tpu_custom_call.1']
    #allocation4 [shape = 's32[1]{0}', space=sflag, size = 0x4, scoped, tag = 'scoped memory for tpu_custom_call.1']
    #allocation5 [shape = 'u8[196608]{0}', space=vmem, size = 0x30000, scoped, tag = 'input window, operand 1, single buffered']
    #allocation6 [shape = 's32[1]{0}', space=sflag, size = 0x4, scoped, tag = 'scoped memory for tpu_custom_call.1']
    #allocation7 [shape = 'u8[1536]{0}', space=vmem, size = 0x800, scoped, tag = 'input window, operand 2, single buffered']
    #allocation8 [shape = 'u8[65536]{0}', space=vmem, size = 0x10000, scoped, tag = 'input window, operand 3, single buffered']
    #allocation9 [shape = 's32[1]{0}', space=sflag, size = 0x4, scoped, tag = 'scoped memory for tpu_custom_call.1']
    #allocation10 [shape = 'u8[8192]{0}', space=vmem, size = 0x2000, scoped, tag = 'output window, operand 0, single buffered']
    %10 = vsyncpa [#allocation3], 0
    %11 = vsyncpa [#allocation6], 0
    %12 = vsyncpa [#allocation9], 0
    %13 = vsyncpa [#allocation4], 0
    // Predicated region
    $region2: #{tpu_custom_call.1} parent=1 // pred_check
      _
    $region3: #{tpu_custom_call.1} parent=1 // pred_check_branch
      %15 = sbr.rel (0) target = $region5
    $region4: #{tpu_custom_call.1} parent=1 // pred_region
      %17 = vsyncadd [#allocation3], 0
      %s18 = sshll.u32 %s0, 4
      %s19 = int_to_ptr.hbm [resolvable:$true] %s18
      %s20 = sshll.u32 [#allocation2], 4
      %s21 = int_to_ptr.vmem [resolvable:$true] %s20
      %26 = dma.hbm_to_vmem [thread:$0]  %s19, 256, %s21, [#allocation3], 128, 128, 8
    $region5: #{tpu_custom_call.1} parent=1 // pred_fallthru
      _
    // Predicated region
    $region6: #{tpu_custom_call.1} parent=1 // pred_check
      _
    $region7: #{tpu_custom_call.1} parent=1 // pred_check_branch
      %28 = sbr.rel (0) target = $region9
    $region8: #{tpu_custom_call.1} parent=1 // pred_region
      %30 = vsyncadd [#allocation6], 0
      %s31 = sshll.u32 %s1, 4
      %s32 = int_to_ptr.hbm [resolvable:$true] %s31
      %s33 = sshll.u32 [#allocation5], 4
      %s34 = int_to_ptr.vmem [resolvable:$true] %s33
      %39 = dma.hbm_to_vmem [thread:$0]  %s32, 6144, %s34, [#allocation6], 384, 384, 24
    $region9: #{tpu_custom_call.1} parent=1 // pred_fallthru
      _
    // Predicated region
    $region10: #{tpu_custom_call.1} parent=1 // pred_check
      _
    $region11: #{tpu_custom_call.1} parent=1 // pred_check_branch
      %41 = sbr.rel (0) target = $region13
    $region12: #{tpu_custom_call.1} parent=1 // pred_region
      %43 = vsyncadd [#allocation6], 0
      %s45 = sshll.u32 %s2, 4
      %s46 = int_to_ptr.hbm [resolvable:$true] %s45
      %s47 = sshll.u32 [#allocation7], 4
      %s48 = int_to_ptr.vmem [resolvable:$true] %s47
      %50 = dma.hbm_to_vmem [thread:$0]  %s46, 48, %s48, [#allocation6]
    $region13: #{tpu_custom_call.1} parent=1 // pred_fallthru
      _
    // Predicated region
    $region14: #{tpu_custom_call.1} parent=1 // pred_check
      _
    $region15: #{tpu_custom_call.1} parent=1 // pred_check_branch
      %52 = sbr.rel (0) target = $region17
    $region16: #{tpu_custom_call.1} parent=1 // pred_region
      %54 = vsyncadd [#allocation9], 0
      %s55 = sshll.u32 %s3, 4
      %s56 = int_to_ptr.hbm [resolvable:$true] %s55
      %s57 = sshll.u32 [#allocation8], 4
      %s58 = int_to_ptr.vmem [resolvable:$true] %s57
      %63 = dma.hbm_to_vmem [thread:$0]  %s56, 2048, %s58, [#allocation9], 128, 128, 8
    $region17: #{tpu_custom_call.1} parent=1 // pred_fallthru
      _
    // Predicated region
    $region18: #{tpu_custom_call.1} parent=1 // pred_check
      _
    $region19: #{tpu_custom_call.1} parent=1 // pred_check_branch
      %65 = sbr.rel (0) target = $region21
    $region20: #{tpu_custom_call.1} parent=1 // pred_region
      _
    $region21: #{tpu_custom_call.1} parent=1 // pred_fallthru
      _
    // Predicated region
    $region22: #{tpu_custom_call.1} parent=1 // pred_check
      _
    $region23: #{tpu_custom_call.1} parent=1 // pred_check_branch
      %67 = sbr.rel (0) target = $region25
    $region24: #{tpu_custom_call.1} parent=1 // pred_region
      %69 = dma.done [#allocation3], 256
    $region25: #{tpu_custom_call.1} parent=1 // pred_fallthru
      _
    // Predicated region
    $region26: #{tpu_custom_call.1} parent=1 // pred_check
      _
    $region27: #{tpu_custom_call.1} parent=1 // pred_check_branch
      %71 = sbr.rel (0) target = $region29
    $region28: #{tpu_custom_call.1} parent=1 // pred_region
      %73 = dma.done [#allocation6], 6144
    $region29: #{tpu_custom_call.1} parent=1 // pred_fallthru
      _
    // Predicated region
    $region30: #{tpu_custom_call.1} parent=1 // pred_check
      _
    $region31: #{tpu_custom_call.1} parent=1 // pred_check_branch
      %75 = sbr.rel (0) target = $region33
    $region32: #{tpu_custom_call.1} parent=1 // pred_region
      %77 = dma.done [#allocation6], 48
    $region33: #{tpu_custom_call.1} parent=1 // pred_fallthru
      _
    // Predicated region
    $region34: #{tpu_custom_call.1} parent=1 // pred_check
      _
    $region35: #{tpu_custom_call.1} parent=1 // pred_check_branch
      %79 = sbr.rel (0) target = $region37
    $region36: #{tpu_custom_call.1} parent=1 // pred_region
      %81 = dma.done [#allocation9], 2048
    $region37: #{tpu_custom_call.1} parent=1 // pred_fallthru
      _
    %v82 = vld [vmem:[#allocation2] sm:$0xff]
    %v83 = vld [vmem:[#allocation2 + $0x8] sm:$0xff]
    %v84 = vld [vmem:[#allocation5] sm:$0xff]
    %v85 = vld [vmem:[#allocation5 + $0x8] sm:$0xff]
    %v86 = vld [vmem:[#allocation5 + $0x10] sm:$0xff]
    %v87 = vld [vmem:[#allocation5 + $0x18] sm:$0xff]
    %v88 = vld [vmem:[#allocation5 + $0x20] sm:$0xff]
    %v89 = vld [vmem:[#allocation5 + $0x28] sm:$0xff]
    %v90 = vld [vmem:[#allocation5 + $0x30] sm:$0xff]
    %v91 = vld [vmem:[#allocation5 + $0x38] sm:$0xff]
    %v92 = vld [vmem:[#allocation5 + $0x40] sm:$0xff]
    %v93 = vld [vmem:[#allocation5 + $0x48] sm:$0xff]
    %v94 = vld [vmem:[#allocation5 + $0x50] sm:$0xff]
    %v95 = vld [vmem:[#allocation5 + $0x58] sm:$0xff]
    %v96 = vld [vmem:[#allocation5 + $0x60] sm:$0xff]
    %v97 = vld [vmem:[#allocation5 + $0x68] sm:$0xff]
    %v98 = vld [vmem:[#allocation5 + $0x70] sm:$0xff]
    %v99 = vld [vmem:[#allocation5 + $0x78] sm:$0xff]
    %v100 = vld [vmem:[#allocation5 + $0x80] sm:$0xff]
    %v101 = vld [vmem:[#allocation5 + $0x88] sm:$0xff]
    %v102 = vld [vmem:[#allocation5 + $0x90] sm:$0xff]
    %v103 = vld [vmem:[#allocation5 + $0x98] sm:$0xff]
    %v104 = vld [vmem:[#allocation5 + $0xa0] sm:$0xff]
    %v105 = vld [vmem:[#allocation5 + $0xa8] sm:$0xff]
    %v106 = vld [vmem:[#allocation5 + $0xb0] sm:$0xff]
    %v107 = vld [vmem:[#allocation5 + $0xb8] sm:$0xff]
    %v108 = vld [vmem:[#allocation5 + $0xc0] sm:$0xff]
    %v109 = vld [vmem:[#allocation5 + $0xc8] sm:$0xff]
    %v110 = vld [vmem:[#allocation5 + $0xd0] sm:$0xff]
    %v111 = vld [vmem:[#allocation5 + $0xd8] sm:$0xff]
    %v112 = vld [vmem:[#allocation5 + $0xe0] sm:$0xff]
    %v113 = vld [vmem:[#allocation5 + $0xe8] sm:$0xff]
    %v114 = vld [vmem:[#allocation5 + $0xf0] sm:$0xff]
    %v115 = vld [vmem:[#allocation5 + $0xf8] sm:$0xff]
    %v116 = vld [vmem:[#allocation5 + $0x100] sm:$0xff]
    %v117 = vld [vmem:[#allocation5 + $0x108] sm:$0xff]
    %v118 = vld [vmem:[#allocation5 + $0x110] sm:$0xff]
    %v119 = vld [vmem:[#allocation5 + $0x118] sm:$0xff]
    %v120 = vld [vmem:[#allocation5 + $0x120] sm:$0xff]
    %v121 = vld [vmem:[#allocation5 + $0x128] sm:$0xff]
    %v122 = vld [vmem:[#allocation5 + $0x130] sm:$0xff]
    %v123 = vld [vmem:[#allocation5 + $0x138] sm:$0xff]
    %v124 = vld [vmem:[#allocation5 + $0x140] sm:$0xff]
    %v125 = vld [vmem:[#allocation5 + $0x148] sm:$0xff]
    %v126 = vld [vmem:[#allocation5 + $0x150] sm:$0xff]
    %v127 = vld [vmem:[#allocation5 + $0x158] sm:$0xff]
    %v128 = vld [vmem:[#allocation5 + $0x160] sm:$0xff]
    %v129 = vld [vmem:[#allocation5 + $0x168] sm:$0xff]
    %v130 = vld [vmem:[#allocation5 + $0x170] sm:$0xff]
    %v131 = vld [vmem:[#allocation5 + $0x178] sm:$0xff]
    %v132 = vld [vmem:[#allocation7] sm:$0x7]
    %v134 = vperm.slane %v132, 0
    %v135 = vperm.slane %v132, 1
    %v136 = vperm.slane %v132, 2
    %140 = vmatpush.msra.mxu0 %v129
    %141 = vmatpush.msra.mxu0 %v126
    %142 = vmatpush.msra.mxu0 %v123
    %143 = vmatpush.msra.mxu0 %v120
    %144 = vmatpush.msra.mxu0 %v117
    %145 = vmatpush.msra.mxu0 %v114
    %146 = vmatpush.msra.mxu0 %v111
    %147 = vmatpush.msra.mxu0 %v108
    %148 = vmatpush.msra.mxu0 %v105
    %149 = vmatpush.msra.mxu0 %v102
    %150 = vmatpush.msra.mxu0 %v99
    %151 = vmatpush.msra.mxu0 %v96
    %152 = vmatpush.msra.mxu0 %v93
    %153 = vmatpush.msra.mxu0 %v90
    %154 = vmatpush.msra.mxu0 %v87
    %155 = vmatpush.msra.mxu0 %v84
    %156 = vmatmul.f32.gmra.mxu0 %v82
    %v157 = vpop.f32.mrf.mxu0
    %v158 = vadd.f32 %v134, %v157
    %159 = vmatmul.f32.gmra.mxu0 %v83
    %v160 = vpop.f32.mrf.mxu0
    %v161 = vadd.f32 %v134, %v160
    %162 = vdwg.mxu0
    %163 = vmatpush.msra.mxu0 %v130
    %164 = vmatpush.msra.mxu0 %v127
    %165 = vmatpush.msra.mxu0 %v124
    %166 = vmatpush.msra.mxu0 %v121
    %167 = vmatpush.msra.mxu0 %v118
    %168 = vmatpush.msra.mxu0 %v115
    %169 = vmatpush.msra.mxu0 %v112
    %170 = vmatpush.msra.mxu0 %v109
    %171 = vmatpush.msra.mxu0 %v106
    %172 = vmatpush.msra.mxu0 %v103
    %173 = vmatpush.msra.mxu0 %v100
    %174 = vmatpush.msra.mxu0 %v97
    %175 = vmatpush.msra.mxu0 %v94
    %176 = vmatpush.msra.mxu0 %v91
    %177 = vmatpush.msra.mxu0 %v88
    %178 = vmatpush.msra.mxu0 %v85
    %179 = vmatmul.f32.gmra.mxu0 %v82
    %v180 = vpop.f32.mrf.mxu0
    %v181 = vadd.f32 %v135, %v180
    %182 = vmatmul.f32.gmra.mxu0 %v83
    %v183 = vpop.f32.mrf.mxu0
    %v184 = vadd.f32 %v135, %v183
    %185 = vdwg.mxu0
    %186 = vmatpush.msra.mxu0 %v131
    %187 = vmatpush.msra.mxu0 %v128
    %188 = vmatpush.msra.mxu0 %v125
    %189 = vmatpush.msra.mxu0 %v122
    %190 = vmatpush.msra.mxu0 %v119
    %191 = vmatpush.msra.mxu0 %v116
    %192 = vmatpush.msra.mxu0 %v113
    %193 = vmatpush.msra.mxu0 %v110
    %194 = vmatpush.msra.mxu0 %v107
    %195 = vmatpush.msra.mxu0 %v104
    %196 = vmatpush.msra.mxu0 %v101
    %197 = vmatpush.msra.mxu0 %v98
    %198 = vmatpush.msra.mxu0 %v95
    %199 = vmatpush.msra.mxu0 %v92
    %200 = vmatpush.msra.mxu0 %v89
    %201 = vmatpush.msra.mxu0 %v86
    %202 = vmatmul.f32.gmra.mxu0 %v82
    %v203 = vpop.f32.mrf.mxu0
    %v204 = vadd.f32 %v136, %v203
    %205 = vmatmul.f32.gmra.mxu0 %v83
    %v206 = vpop.f32.mrf.mxu0
    %v207 = vadd.f32 %v136, %v206
    %208 = vdwg.mxu0
    %209 = vmatpush.xpose.msra.mxu0 0.0
    %210 = vmatpush.xpose.msra.mxu0 0.0
    %211 = vmatpush.xpose.msra.mxu0 0.0
    %212 = vmatpush.xpose.msra.mxu0 0.0
    %213 = vmatpush.xpose.msra.mxu0 0.0
    %214 = vmatpush.xpose.msra.mxu0 0.0
    %215 = vmatpush.xpose.msra.mxu0 0.0
    %216 = vmatpush.xpose.msra.mxu0 0.0
    %217 = vmatpush.xpose.msra.mxu0 0.0
    %218 = vmatpush.xpose.msra.mxu0 0.0
    %219 = vmatpush.xpose.msra.mxu0 0.0
    %220 = vmatpush.xpose.msra.mxu0 0.0
    %221 = vmatpush.xpose.msra.mxu0 0.0
    %222 = vmatpush.xpose.msra.mxu0 0.0
    %223 = vmatpush.xpose.msra.mxu0 0.0
    %224 = vmatpush.xpose.msra.mxu0 %v181
    %225 = vmatmul.f32.gmra.mxu0 %v158
    %v226 = vpop.f32.mrf.mxu0
    %v227 = vadd.f32 0.0, %v226
    %228 = vdwg.mxu0
    %229 = vmatpush.xpose.msra.mxu0 0.0
    %230 = vmatpush.xpose.msra.mxu0 0.0
    %231 = vmatpush.xpose.msra.mxu0 0.0
    %232 = vmatpush.xpose.msra.mxu0 0.0
    %233 = vmatpush.xpose.msra.mxu0 0.0
    %234 = vmatpush.xpose.msra.mxu0 0.0
    %235 = vmatpush.xpose.msra.mxu0 0.0
    %236 = vmatpush.xpose.msra.mxu0 0.0
    %237 = vmatpush.xpose.msra.mxu0 0.0
    %238 = vmatpush.xpose.msra.mxu0 0.0
    %239 = vmatpush.xpose.msra.mxu0 0.0
    %240 = vmatpush.xpose.msra.mxu0 0.0
    %241 = vmatpush.xpose.msra.mxu0 0.0
    %242 = vmatpush.xpose.msra.mxu0 0.0
    %243 = vmatpush.xpose.msra.mxu0 0.0
    %244 = vmatpush.xpose.msra.mxu0 %v184
    %245 = vmatmul.f32.gmra.mxu0 %v161
    %v246 = vpop.f32.mrf.mxu0
    %v247 = vadd.f32 0.0, %v246
    %248 = vdwg.mxu0
    %vm249 = vcmask 64512
    %v250 = vsel %vm249, %v227, -inf
    %251 = vmax.xlane.f32.xlu0 %v250
    %v252 = vpop.xlane.xlu0 %251
    %v253 = vsel %vm249, %v247, -inf
    %254 = vmax.xlane.f32.xlu0 %v253
    %v255 = vpop.xlane.xlu0 %254
    %v256 = vsub.f32 %v227, %v252
    %v257 = vsub.f32 %v247, %v255
    %v258 = vmul.f32 %v256, 1.442695
    %v259 = vpow.pop %v258
    %v260 = vmul.f32 %v257, 1.442695
    %v261 = vpow.pop %v260
    %v262 = vsel %vm249, %v259, 0.0
    %263 = vadd.xlane.f32.xlu0 %v262
    %v264 = vpop.xlane.xlu0 %263
    %v265 = vsel %vm249, %v261, 0.0
    %266 = vadd.xlane.f32.xlu0 %v265
    %v267 = vpop.xlane.xlu0 %266
    %v268 = vrcp.pop %v264
    %v269 = vrcp.pop %v267
    %v270 = vmul.f32 %v259, %v268
    %v271 = vmul.f32 %v261, %v269
    %v273 = vsel %vm249, %v270, 0
    %275 = vmatpush.msra.mxu0 0.0
    %276 = vmatpush.msra.mxu0 0.0
    %277 = vmatpush.msra.mxu0 0.0
    %278 = vmatpush.msra.mxu0 0.0
    %279 = vmatpush.msra.mxu0 0.0
    %280 = vmatpush.msra.mxu0 0.0
    %281 = vmatpush.msra.mxu0 0.0
    %282 = vmatpush.msra.mxu0 0.0
    %283 = vmatpush.msra.mxu0 0.0
    %284 = vmatpush.msra.mxu0 0.0
    %285 = vmatpush.msra.mxu0 0.0
    %286 = vmatpush.msra.mxu0 0.0
    %287 = vmatpush.msra.mxu0 0.0
    %288 = vmatpush.msra.mxu0 0.0
    %289 = vmatpush.msra.mxu0 0.0
    %290 = vmatpush.msra.mxu0 %v204
    %291 = vmatmul.f32.gmra.mxu0 %v273
    %v292 = vpop.f32.mrf.mxu0
    %v293 = vadd.f32 0.0, %v292
    %294 = vdwg.mxu0
    %v296 = vsel %vm249, %v271, 0
    %298 = vmatpush.msra.mxu0 0.0
    %299 = vmatpush.msra.mxu0 0.0
    %300 = vmatpush.msra.mxu0 0.0
    %301 = vmatpush.msra.mxu0 0.0
    %302 = vmatpush.msra.mxu0 0.0
    %303 = vmatpush.msra.mxu0 0.0
    %304 = vmatpush.msra.mxu0 0.0
    %305 = vmatpush.msra.mxu0 0.0
    %306 = vmatpush.msra.mxu0 0.0
    %307 = vmatpush.msra.mxu0 0.0
    %308 = vmatpush.msra.mxu0 0.0
    %309 = vmatpush.msra.mxu0 0.0
    %310 = vmatpush.msra.mxu0 0.0
    %311 = vmatpush.msra.mxu0 0.0
    %312 = vmatpush.msra.mxu0 0.0
    %313 = vmatpush.msra.mxu0 %v207
    %314 = vmatmul.f32.gmra.mxu0 %v296
    %v315 = vpop.f32.mrf.mxu0
    %v316 = vadd.f32 0.0, %v315
    %317 = vdwg.mxu0
    %v318 = vld [vmem:[#allocation8] sm:$0xff]
    %v319 = vld [vmem:[#allocation8 + $0x8] sm:$0xff]
    %v320 = vld [vmem:[#allocation8 + $0x10] sm:$0xff]
    %v321 = vld [vmem:[#allocation8 + $0x18] sm:$0xff]
    %v322 = vld [vmem:[#allocation8 + $0x20] sm:$0xff]
    %v323 = vld [vmem:[#allocation8 + $0x28] sm:$0xff]
    %v324 = vld [vmem:[#allocation8 + $0x30] sm:$0xff]
    %v325 = vld [vmem:[#allocation8 + $0x38] sm:$0xff]
    %v326 = vld [vmem:[#allocation8 + $0x40] sm:$0xff]
    %v327 = vld [vmem:[#allocation8 + $0x48] sm:$0xff]
    %v328 = vld [vmem:[#allocation8 + $0x50] sm:$0xff]
    %v329 = vld [vmem:[#allocation8 + $0x58] sm:$0xff]
    %v330 = vld [vmem:[#allocation8 + $0x60] sm:$0xff]
    %v331 = vld [vmem:[#allocation8 + $0x68] sm:$0xff]
    %v332 = vld [vmem:[#allocation8 + $0x70] sm:$0xff]
    %v333 = vld [vmem:[#allocation8 + $0x78] sm:$0xff]
    %v334 = vld [vmem:[%s4] sm:$0x1]
    %v336 = vperm.slane %v334, 0
    %338 = vmatpush.msra.mxu0 %v333
    %339 = vmatpush.msra.mxu0 %v332
    %340 = vmatpush.msra.mxu0 %v331
    %341 = vmatpush.msra.mxu0 %v330
    %342 = vmatpush.msra.mxu0 %v329
    %343 = vmatpush.msra.mxu0 %v328
    %344 = vmatpush.msra.mxu0 %v327
    %345 = vmatpush.msra.mxu0 %v326
    %346 = vmatpush.msra.mxu0 %v325
    %347 = vmatpush.msra.mxu0 %v324
    %348 = vmatpush.msra.mxu0 %v323
    %349 = vmatpush.msra.mxu0 %v322
    %350 = vmatpush.msra.mxu0 %v321
    %351 = vmatpush.msra.mxu0 %v320
    %352 = vmatpush.msra.mxu0 %v319
    %353 = vmatpush.msra.mxu0 %v318
    %354 = vmatmul.f32.gmra.mxu0 %v293
    %v355 = vpop.f32.mrf.mxu0
    %v356 = vadd.f32 %v336, %v355
    %357 = vmatmul.f32.gmra.mxu0 %v316
    %v358 = vpop.f32.mrf.mxu0
    %v359 = vadd.f32 %v336, %v358
    %360 = vdwg.mxu0
    %361 = vst [vmem:[#allocation10] sm:$0xff] %v356
    %362 = vst [vmem:[#allocation10 + $0x8] sm:$0xff] %v359
    // Predicated region
    $region38: #{tpu_custom_call.1} parent=1 // pred_check
      _
    $region39: #{tpu_custom_call.1} parent=1 // pred_check_branch
      %364 = sbr.rel (0) target = $region41
    $region40: #{tpu_custom_call.1} parent=1 // pred_region
      %366 = vsyncadd [#allocation4], 0
      %s367 = sshll.u32 [#allocation10], 4
      %s368 = int_to_ptr.vmem [resolvable:$true] %s367
      %s369 = sshll.u32 %s5, 4
      %s370 = int_to_ptr.hbm [resolvable:$true] %s369
      %375 = dma.vmem_to_hbm [thread:$0]  %s368, 256, %s370, [#allocation4], 128, 128, 8
    $region41: #{tpu_custom_call.1} parent=1 // pred_fallthru
      _
    // Predicated region
    $region42: #{tpu_custom_call.1} parent=1 // pred_check
      _
    $region43: #{tpu_custom_call.1} parent=1 // pred_check_branch
      %377 = sbr.rel (0) target = $region45
    $region44: #{tpu_custom_call.1} parent=1 // pred_region
      %379 = dma.done [#allocation4], 256
    $region45: #{tpu_custom_call.1} parent=1 // pred_fallthru
      _
    %380 = vsyncpa [#allocation3], 1
    %381 = vsyncpa [#allocation6], 1
    %382 = vsyncpa [#allocation9], 1
    %383 = vsyncpa [#allocation4], 1

</llo_original>
